<compile_context>
chip_gen: v7x
topology: tpu7x:2x2x1
jax: 0.10.0
libtpu: 0.0.40
codegen_flags: <defaults>
</compile_context>

<pallas_src>
import jax
import jax.numpy as jnp
from jax.experimental import pallas as pl
from jax.experimental.pallas import tpu as pltpu

_LANE = 128
_SUBLANE = 8
_MIB = 1024 * 1024


def _round_up(n, m):
    return ((n + m - 1) // m) * m


# ---------------------------------------------------------------------------
# Kernel
# ---------------------------------------------------------------------------
def fourier_kernel(xt_ref, scale_ref, phase_ref, w_ref, b_ref, o_ref):
    """Grid = (batch tiles, K blocks); K is innermost / "arbitrary".

    xt_ref    : (TB, KB)  x lane-tiled 2F times (pure layout, no arithmetic)
    scale_ref : (1,  KB)  per-lane harmonic multiplier (1..F, twice)
    phase_ref : (1,  KB)  0 on sin lanes, pi/2 on cos lanes (cos t = sin(t+pi/2))
    w_ref     : (KB, OP)  packed coef block (row l = f*I + i)
    b_ref     : (1,  OP)  folded constant-feature bias
    o_ref     : (TB, OP)  f32 output block, resident accumulator across K
    """
    k = pl.program_id(1)

    @pl.when(k == 0)
    def _init():
        # Seed the resident output block with the folded bias.
        o_ref[...] = jnp.broadcast_to(b_ref[...], o_ref.shape)

    # VPU FMA for the argument, a single wide EUP sin builds both sin and cos
    # features, then one MXU pass accumulates into the resident output block.
    # Padded lanes are exact: their x / scale / phase / weight rows are all 0.
    theta = xt_ref[...] * scale_ref[...] + phase_ref[...]
    o_ref[...] += jnp.dot(jnp.sin(theta), w_ref[...],
                          preferred_element_type=jnp.float32)


# ---------------------------------------------------------------------------
# One-time parameter repack (run at init time, not per forward)
# ---------------------------------------------------------------------------
def prepare_params(coef, frequency_count):
    """coef (O, I, 2F+1) -> (w_packed (LP, OP), bias (1, OP), scale (1, LP), phase (1, LP)).

    Packed column l = f*I + i with f in [0, 2F): f < F are sin_{f+1}, f >= F are
    cos_{f-F+1}.  The constant feature is folded into `bias`.
    """
    O, I, n_feat = coef.shape
    F = frequency_count
    assert F >= 1 and n_feat == 2 * F + 1
    L = 2 * F * I
    LP = _round_up(L, _LANE)
    OP = _round_up(O, _LANE)

    coef = coef.astype(jnp.float32)
    w = jnp.transpose(coef[:, :, :2 * F], (2, 1, 0)).reshape(L, O)   # row = f*I + i
    w = jnp.pad(w, ((0, LP - L), (0, OP - O)))

    bias = jnp.pad(jnp.sum(coef[:, :, 2 * F], axis=1), (0, OP - O)).reshape(1, OP)

    freq = jnp.arange(1, F + 1, dtype=jnp.float32)                   # (F,)
    scale = jnp.tile(jnp.repeat(freq, I), 2)                         # (2F*I,)
    scale = jnp.pad(scale, (0, LP - L)).reshape(1, LP)

    phase = jnp.concatenate([jnp.zeros((F * I,), jnp.float32),
                             jnp.full((F * I,), jnp.float32(jnp.pi / 2))])
    phase = jnp.pad(phase, (0, LP - L)).reshape(1, LP)
    return w, bias, scale, phase


# ---------------------------------------------------------------------------
# Generation-aware tile planning
# ---------------------------------------------------------------------------
def _tpu_info():
    """(per-core VMEM bytes, TensorCores per chip), with conservative fallbacks."""
    vmem_cap = 64 * _MIB           # most conservative (v7x per-TensorCore VMEM)
    n_tc = 0
    try:
        info = pltpu.get_tpu_info()
        v = getattr(info, "vmem_capacity_bytes", None)
        if v:
            vmem_cap = int(v)
        for name in ("num_tensorcores", "tensorcore_count", "num_cores",
                     "num_cores_per_chip", "core_count"):
            c = getattr(info, name, None)
            if c:
                n_tc = int(c)
                break
    except Exception:
        pass
    if n_tc <= 0:
        # 64-MiB-per-core parts (v7x) carry 2 TensorCores per chip.
        n_tc = 2 if vmem_cap <= 64 * _MIB else 1
    return vmem_cap, n_tc


def _plan_tiles(B, L, OP, *, block_batch=None, block_k=None):
    """Pick (TB, KB, LP, n_k, vmem_limit) from the chip's VMEM / core count."""
    vmem_cap, n_tc = _tpu_info()
    # ~44 MiB limit on 64-MiB v7x parts, ~108 MiB on 128-MiB v5e/v6e parts.
    vmem_limit = max(32 * _MIB, min(vmem_cap - 20 * _MIB, 108 * _MIB))
    budget = max(24 * _MIB, vmem_limit - 8 * _MIB)

    LP0 = _round_up(L, _LANE)

    # --- K (feature) block: multiple of 128 that divides the padded width.
    if block_k is not None:
        KB = _round_up(block_k, _LANE)
        LP = _round_up(LP0, KB)
    else:
        LP = LP0
        KB = _LANE
        for cand in range(min(LP0, 2048), 0, -_LANE):
            w_blk = 2 * cand * OP * 4
            if LP0 % cand == 0 and w_blk + _MIB <= budget:
                KB = cand
                break
        # TODO(synk): for a huge OP where even KB=128 overflows VMEM, an
        # output-column grid axis would be required; not implemented here.
    n_k = LP // KB

    # --- Batch tile: largest multiple of 8 whose VMEM footprint fits.
    b_pad = _round_up(B, _SUBLANE)
    if block_batch is not None:
        TB = min(_round_up(block_batch, _SUBLANE), b_pad)
    else:
        max_tb = 1024 if vmem_cap >= 96 * _MIB else 512
        TB = min(max_tb, b_pad)

        def fits(tb):
            # 2x input block (double buffer) + ~2x in-kernel temporaries
            # + 2x output block + 2x weight block + small constants + margin.
            need = (4 * tb * KB * 4 + 2 * tb * OP * 4 + 2 * KB * OP * 4
                    + 4 * KB * 4 + 2 * OP * 4 + _MIB)
            return need <= budget

        while TB > _SUBLANE and not fits(TB):
            TB -= _SUBLANE
        TB = max(TB, _SUBLANE)

        # On 2-TensorCore chips ensure the "parallel" batch axis has >= 2 steps.
        if n_tc >= 2 and B > _SUBLANE and TB >= B:
            TB = max(_SUBLANE, _round_up((B + 1) // 2, _SUBLANE))

    return TB, KB, LP, n_k, vmem_limit


# ---------------------------------------------------------------------------
# Forward wrapper
# ---------------------------------------------------------------------------
def custom_fourier_layer(x, params, *, output_size, frequency_count,
                         block_batch=None, block_k=None):
    """x: (B, input_size) float; params: output of prepare_params()."""
    w, bias, scale, phase = params
    B, I = x.shape
    F = frequency_count
    L = 2 * F * I
    OP = w.shape[1]
    assert w.shape[0] == _round_up(L, _LANE)
    assert OP == _round_up(output_size, _LANE)

    TB, KB, LP, n_k, vmem_limit = _plan_tiles(
        B, L, OP, block_batch=block_batch, block_k=block_k)
    BP = _round_up(B, TB)
    grid_b = BP // TB

    # Extra zero row-padding if an explicit block_k pushed LP past round_up(L,128).
    if LP > w.shape[0]:
        extra = LP - w.shape[0]
        w = jnp.pad(w, ((0, extra), (0, 0)))
        scale = jnp.pad(scale, ((0, 0), (0, extra)))
        phase = jnp.pad(phase, ((0, 0), (0, extra)))

    # Pure layout plumbing: lane-tile x 2F times (sin block + cos block) and pad.
    # Zero-padded lanes/rows are exact (their scale/phase/weights are zero).
    xt = jnp.tile(x.astype(jnp.float32), (1, 2 * F))
    xt = jnp.pad(xt, ((0, BP - B), (0, LP - L)))

    def run(single_buffer_const):
        def const_spec(shape, index_map, constant):
            # Constant-index operands don't need double buffering (review item).
            if constant and single_buffer_const:
                return pl.BlockSpec(shape, index_map, pipeline_mode=pl.Buffered(1))
            return pl.BlockSpec(shape, index_map)

        in_specs = [
            pl.BlockSpec((TB, KB), lambda b, k: (b, k)),           # x tiles
            const_spec((1, KB), lambda b, k: (0, k), n_k == 1),    # scale
            const_spec((1, KB), lambda b, k: (0, k), n_k == 1),    # phase
            const_spec((KB, OP), lambda b, k: (k, 0), n_k == 1),   # weight
            const_spec((1, OP), lambda b, k: (0, 0), True),        # bias
        ]
        return pl.pallas_call(
            fourier_kernel,
            out_shape=jax.ShapeDtypeStruct((BP, OP), jnp.float32),
            grid_spec=pltpu.PrefetchScalarGridSpec(
                num_scalar_prefetch=0,
                grid=(grid_b, n_k),                 # reduction axis last
                in_specs=in_specs,
                out_specs=pl.BlockSpec((TB, OP), lambda b, k: (b, 0)),
            ),
            compiler_params=pltpu.CompilerParams(
                dimension_semantics=("parallel", "arbitrary"),
                vmem_limit_bytes=int(vmem_limit),
            ),
            cost_estimate=pl.CostEstimate(
                flops=2 * BP * LP * OP,
                transcendentals=BP * LP,
                bytes_accessed=4 * (BP * LP + grid_b * LP * OP + BP * OP
                                    + 2 * LP + OP),
            ),
        )(xt, scale, phase, w, bias)

    try:
        out = run(True)       # with single-buffered constant-index operands
    except Exception:
        out = run(False)      # fallback if pipeline_mode=pl.Buffered(1) is rejected

    return out[:B, :output_size]


# ---------------------------------------------------------------------------
# Pure-JAX reference mirroring the PyTorch forward exactly
# ---------------------------------------------------------------------------
def reference(x, coef, frequency_count):
    F = frequency_count
    sin_vals = jnp.stack([jnp.sin((k + 1.0) * x) for k in range(F)], axis=2)
    cos_vals = jnp.stack([jnp.cos((k + 1.0) * x) for k in range(F)], axis=2)
    ones = jnp.ones(x.shape + (1,), dtype=x.dtype)
    values = jnp.concatenate([sin_vals, cos_vals, ones], axis=2)   # (B, I, 2F+1)
    return jnp.einsum("jif,bif->bj", coef, values)


if __name__ == "__main__":
    key = jax.random.PRNGKey(0)
    k_x, k_c = jax.random.split(key)

    batch = 20            # not a tile multiple: exercises batch pad + slice
    input_size = 24       # 2*F*I = 144 -> LP = 256: exercises the K accumulation axis
    output_size = 32
    frequency_count = 3

    x = jax.random.normal(k_x, (batch, input_size), dtype=jnp.float32)
    coef = (
        jax.random.normal(
            k_c, (output_size, input_size, 2 * frequency_count + 1),
            dtype=jnp.float32)
        * 0.1
    )

    # One-time weight/bias/scale/phase repack, hoisted out of the per-call path.
    params = prepare_params(coef, frequency_count)

    out = custom_fourier_layer(
        x, params,
        output_size=output_size,
        frequency_count=frequency_count,
        block_batch=8,     # small tiles so the test runs a real (3, 2) grid
        block_k=128,
    )
    out = jax.block_until_ready(out)

    ref = reference(x, coef, frequency_count)
    assert out.shape == (batch, output_size)
    max_err = jnp.max(jnp.abs(out - ref))
    assert jnp.allclose(out, ref, atol=1e-4, rtol=1e-4), f"max abs diff {max_err}"

    print("KERNEL_OK")
</pallas_src>

<mosaic_0001>
module attributes {stable_mosaic.version = 11 : i64} {
  func.func @fourier_kernel(%arg0: i32, %arg1: i32, %arg2: memref<8x128xf32, #tpu.memory_space<vmem>>, %arg3: memref<1x128xf32, #tpu.memory_space<vmem>>, %arg4: memref<1x128xf32, #tpu.memory_space<vmem>>, %arg5: memref<128x128xf32, #tpu.memory_space<vmem>>, %arg6: memref<1x128xf32, #tpu.memory_space<vmem>>, %arg7: memref<8x128xf32, #tpu.memory_space<vmem>>) attributes {dimension_semantics = [#tpu.dimension_semantics<parallel>, #tpu.dimension_semantics<arbitrary>], iteration_bounds = array<i64: 3, 2>, scalar_prefetch = 0 : i64, scratch_operands = 0 : i64, tpu.core_type = #tpu.core_type<tc>, window_params = [{transform_indices = @transform_0, window_bounds = array<i64: 8, 128>}, {transform_indices = @transform_1, window_bounds = array<i64: 1, 128>}, {transform_indices = @transform_2, window_bounds = array<i64: 1, 128>}, {transform_indices = @transform_3, window_bounds = array<i64: 128, 128>}, {pipeline_mode = #tpu.pipeline_mode<synchronous>, transform_indices = @transform_4, window_bounds = array<i64: 1, 128>}, {transform_indices = @transform_5, window_bounds = array<i64: 8, 128>}]} {
    %c0_i32 = arith.constant 0 : i32
    %0 = arith.cmpi eq, %arg1, %c0_i32 : i32
    %1 = arith.extui %0 : i1 to i32
    %c0_i32_0 = arith.constant 0 : i32
    %2 = arith.cmpi ne, %1, %c0_i32_0 : i32
    scf.if %2 {
      %c0_12 = arith.constant 0 : index
      %c0_13 = arith.constant 0 : index
      %16 = vector.load %arg6[%c0_12, %c0_13] : memref<1x128xf32, #tpu.memory_space<vmem>>, vector<1x128xf32>
      %17 = vector.shape_cast %16 : vector<1x128xf32> to vector<1x128xf32>
      %18 = vector.broadcast %17 : vector<1x128xf32> to vector<8x128xf32>
      %c0_14 = arith.constant 0 : index
      %c0_15 = arith.constant 0 : index
      %19 = vector.load %arg7[%c0_14, %c0_15] : memref<8x128xf32, #tpu.memory_space<vmem>>, vector<8x128xf32>
      tpu.vector_store %arg7[%c0_14, %c0_15], %18 {strides = array<i32>} : memref<8x128xf32, #tpu.memory_space<vmem>>, vector<8x128xf32>,
    } else {
    }
    %c0 = arith.constant 0 : index
    %c0_1 = arith.constant 0 : index
    %3 = vector.load %arg2[%c0, %c0_1] : memref<8x128xf32, #tpu.memory_space<vmem>>, vector<8x128xf32>
    %c0_2 = arith.constant 0 : index
    %c0_3 = arith.constant 0 : index
    %4 = vector.load %arg3[%c0_2, %c0_3] : memref<1x128xf32, #tpu.memory_space<vmem>>, vector<1x128xf32>
    %5 = vector.broadcast %4 : vector<1x128xf32> to vector<8x128xf32>
    %6 = arith.mulf %3, %5 : vector<8x128xf32>
    %c0_4 = arith.constant 0 : index
    %c0_5 = arith.constant 0 : index
    %7 = vector.load %arg4[%c0_4, %c0_5] : memref<1x128xf32, #tpu.memory_space<vmem>>, vector<1x128xf32>
    %8 = vector.broadcast %7 : vector<1x128xf32> to vector<8x128xf32>
    %9 = arith.addf %6, %8 : vector<8x128xf32>
    %c0_6 = arith.constant 0 : index
    %c0_7 = arith.constant 0 : index
    %10 = vector.load %arg7[%c0_6, %c0_7] : memref<8x128xf32, #tpu.memory_space<vmem>>, vector<8x128xf32>
    %11 = math.sin %9 : vector<8x128xf32>
    %c0_8 = arith.constant 0 : index
    %c0_9 = arith.constant 0 : index
    %12 = vector.load %arg5[%c0_8, %c0_9] : memref<128x128xf32, #tpu.memory_space<vmem>>, vector<128x128xf32>
    %cst = arith.constant dense<0.000000e+00> : vector<8x128xf32>
    %13 = tpu.matmul %11, %12, %cst {dimension_numbers = #tpu.dot_dimension_numbers<[1], [0], [0], [1], [0, 0, 1, 1], [], []>} : vector<8x128xf32>, vector<128x128xf32>, vector<8x128xf32> -> vector<8x128xf32>
    %14 = arith.addf %10, %13 : vector<8x128xf32>
    %c0_10 = arith.constant 0 : index
    %c0_11 = arith.constant 0 : index
    %15 = vector.load %arg7[%c0_10, %c0_11] : memref<8x128xf32, #tpu.memory_space<vmem>>, vector<8x128xf32>
    tpu.vector_store %arg7[%c0_10, %c0_11], %14 {strides = array<i32>} : memref<8x128xf32, #tpu.memory_space<vmem>>, vector<8x128xf32>,
    return
  }
  func.func @transform_0(%arg0: i32, %arg1: i32) -> (i32, i32) {
    %c0_i32 = arith.constant 0 : i32
    return %arg0, %arg1 : i32, i32
  }
  func.func @transform_1(%arg0: i32, %arg1: i32) -> (i32, i32) {
    %c0_i32 = arith.constant 0 : i32
    %c0_i32_0 = arith.constant 0 : i32
    return %c0_i32, %arg1 : i32, i32
  }
  func.func @transform_2(%arg0: i32, %arg1: i32) -> (i32, i32) {
    %c0_i32 = arith.constant 0 : i32
    %c0_i32_0 = arith.constant 0 : i32
    return %c0_i32, %arg1 : i32, i32
  }
  func.func @transform_3(%arg0: i32, %arg1: i32) -> (i32, i32) {
    %c0_i32 = arith.constant 0 : i32
    %c0_i32_0 = arith.constant 0 : i32
    return %arg1, %c0_i32 : i32, i32
  }
  func.func @transform_4(%arg0: i32, %arg1: i32) -> (i32, i32) {
    %c0_i32 = arith.constant 0 : i32
    %c0_i32_0 = arith.constant 0 : i32
    %c0_i32_1 = arith.constant 0 : i32
    return %c0_i32, %c0_i32_0 : i32, i32
  }
  func.func @transform_5(%arg0: i32, %arg1: i32) -> (i32, i32) {
    %c0_i32 = arith.constant 0 : i32
    %c0_i32_0 = arith.constant 0 : i32
    return %arg0, %c0_i32 : i32, i32
  }
}

module attributes {stable_mosaic.version = 11 : i64} {
  func.func @fourier_kernel(%arg0: i32, %arg1: i32, %arg2: memref<8x128xf32, #tpu.memory_space<vmem>>, %arg3: memref<1x128xf32, #tpu.memory_space<vmem>>, %arg4: memref<1x128xf32, #tpu.memory_space<vmem>>, %arg5: memref<128x128xf32, #tpu.memory_space<vmem>>, %arg6: memref<1x128xf32, #tpu.memory_space<vmem>>, %arg7: memref<8x128xf32, #tpu.memory_space<vmem>>) attributes {dimension_semantics = [#tpu.dimension_semantics<parallel>, #tpu.dimension_semantics<arbitrary>], iteration_bounds = array<i64: 3, 2>, scalar_prefetch = 0 : i64, scratch_operands = 0 : i64, tpu.core_type = #tpu.core_type<tc>, window_params = [{transform_indices = @transform_0, window_bounds = array<i64: 8, 128>}, {transform_indices = @transform_1, window_bounds = array<i64: 1, 128>}, {transform_indices = @transform_2, window_bounds = array<i64: 1, 128>}, {transform_indices = @transform_3, window_bounds = array<i64: 128, 128>}, {pipeline_mode = #tpu.pipeline_mode<synchronous>, transform_indices = @transform_4, window_bounds = array<i64: 1, 128>}, {transform_indices = @transform_5, window_bounds = array<i64: 8, 128>}]} {
    %c0_i32 = arith.constant 0 : i32
    %0 = arith.cmpi eq, %arg1, %c0_i32 : i32
    %1 = arith.extui %0 : i1 to i32
    %c0_i32_0 = arith.constant 0 : i32
    %2 = arith.cmpi ne, %1, %c0_i32_0 : i32
    scf.if %2 {
      %c0_12 = arith.constant 0 : index
      %c0_13 = arith.constant 0 : index
      %16 = vector.load %arg6[%c0_12, %c0_13] : memref<1x128xf32, #tpu.memory_space<vmem>>, vector<1x128xf32>
      %17 = vector.shape_cast %16 : vector<1x128xf32> to vector<1x128xf32>
      %18 = vector.broadcast %17 : vector<1x128xf32> to vector<8x128xf32>
      %c0_14 = arith.constant 0 : index
      %c0_15 = arith.constant 0 : index
      %19 = vector.load %arg7[%c0_14, %c0_15] : memref<8x128xf32, #tpu.memory_space<vmem>>, vector<8x128xf32>
      tpu.vector_store %arg7[%c0_14, %c0_15], %18 {strides = array<i32>} : memref<8x128xf32, #tpu.memory_space<vmem>>, vector<8x128xf32>,
    } else {
    }
    %c0 = arith.constant 0 : index
    %c0_1 = arith.constant 0 : index
    %3 = vector.load %arg2[%c0, %c0_1] : memref<8x128xf32, #tpu.memory_space<vmem>>, vector<8x128xf32>
    %c0_2 = arith.constant 0 : index
    %c0_3 = arith.constant 0 : index
    %4 = vector.load %arg3[%c0_2, %c0_3] : memref<1x128xf32, #tpu.memory_space<vmem>>, vector<1x128xf32>
    %5 = vector.broadcast %4 : vector<1x128xf32> to vector<8x128xf32>
    %6 = arith.mulf %3, %5 : vector<8x128xf32>
    %c0_4 = arith.constant 0 : index
    %c0_5 = arith.constant 0 : index
    %7 = vector.load %arg4[%c0_4, %c0_5] : memref<1x128xf32, #tpu.memory_space<vmem>>, vector<1x128xf32>
    %8 = vector.broadcast %7 : vector<1x128xf32> to vector<8x128xf32>
    %9 = arith.addf %6, %8 : vector<8x128xf32>
    %c0_6 = arith.constant 0 : index
    %c0_7 = arith.constant 0 : index
    %10 = vector.load %arg7[%c0_6, %c0_7] : memref<8x128xf32, #tpu.memory_space<vmem>>, vector<8x128xf32>
    %11 = math.sin %9 : vector<8x128xf32>
    %c0_8 = arith.constant 0 : index
    %c0_9 = arith.constant 0 : index
    %12 = vector.load %arg5[%c0_8, %c0_9] : memref<128x128xf32, #tpu.memory_space<vmem>>, vector<128x128xf32>
    %cst = arith.constant dense<0.000000e+00> : vector<8x128xf32>
    %13 = tpu.matmul %11, %12, %cst {dimension_numbers = #tpu.dot_dimension_numbers<[1], [0], [0], [1], [0, 0, 1, 1], [], []>} : vector<8x128xf32>, vector<128x128xf32>, vector<8x128xf32> -> vector<8x128xf32>
    %14 = arith.addf %10, %13 : vector<8x128xf32>
    %c0_10 = arith.constant 0 : index
    %c0_11 = arith.constant 0 : index
    %15 = vector.load %arg7[%c0_10, %c0_11] : memref<8x128xf32, #tpu.memory_space<vmem>>, vector<8x128xf32>
    tpu.vector_store %arg7[%c0_10, %c0_11], %14 {strides = array<i32>} : memref<8x128xf32, #tpu.memory_space<vmem>>, vector<8x128xf32>,
    return
  }
  func.func @transform_0(%arg0: i32, %arg1: i32) -> (i32, i32) {
    %c0_i32 = arith.constant 0 : i32
    return %arg0, %arg1 : i32, i32
  }
  func.func @transform_1(%arg0: i32, %arg1: i32) -> (i32, i32) {
    %c0_i32 = arith.constant 0 : i32
    %c0_i32_0 = arith.constant 0 : i32
    return %c0_i32, %arg1 : i32, i32
  }
  func.func @transform_2(%arg0: i32, %arg1: i32) -> (i32, i32) {
    %c0_i32 = arith.constant 0 : i32
    %c0_i32_0 = arith.constant 0 : i32
    return %c0_i32, %arg1 : i32, i32
  }
  func.func @transform_3(%arg0: i32, %arg1: i32) -> (i32, i32) {
    %c0_i32 = arith.constant 0 : i32
    %c0_i32_0 = arith.constant 0 : i32
    return %arg1, %c0_i32 : i32, i32
  }
  func.func @transform_4(%arg0: i32, %arg1: i32) -> (i32, i32) {
    %c0_i32 = arith.constant 0 : i32
    %c0_i32_0 = arith.constant 0 : i32
    %c0_i32_1 = arith.constant 0 : i32
    return %c0_i32, %c0_i32_0 : i32, i32
  }
  func.func @transform_5(%arg0: i32, %arg1: i32) -> (i32, i32) {
    %c0_i32 = arith.constant 0 : i32
    %c0_i32_0 = arith.constant 0 : i32
    return %arg0, %c0_i32 : i32, i32
  }
}

</mosaic_0001>

<llo_original>
// kernel: tpu_custom_call.1
$region0: #{tpu_custom_call.1}
  #allocation0 [shape = 'u32[]', space=smem, size = 0x4, offset = 0x4, fixed_abs, tag = 'smem constant byte address 0x4 - core index']
  #allocation1 [shape = 'u32[144,128]{1,0:T(1,128)}', space=vmem, size = 0x12000, scoped, tag = 'internal scratch']
  %s0 = inlined_call_operand.hbm [shape: f32[24,256], index: 0, kind: input, shape index: {}]
  %s1 = inlined_call_operand.vmem [shape: f32[1,256], index: 1, kind: input, shape index: {}]
  %s2 = inlined_call_operand.vmem [shape: f32[1,256], index: 2, kind: input, shape index: {}]
  %s3 = inlined_call_operand.hbm [shape: f32[256,128], index: 3, kind: input, shape index: {}]
  %s4 = inlined_call_operand.vmem [shape: f32[1,128], index: 4, kind: input, shape index: {}]
  %s5 = inlined_call_operand.hbm [shape: f32[24,128], index: 5, kind: output, shape index: {}]
  %s6 = sld [smem:[#allocation0]]
  $region65: #{tpu_custom_call.1} parent=0
    _
  %s8 = ssub.s32 1, %s6
  %s9 = scalar_select 0, %s8, %s6
  $region1: #{tpu_custom_call.1} parent=0
    #allocation2 [shape = 'u8[8192]{0}', space=vmem, size = 0x2000, scoped, tag = 'input window, operand 0']
    #allocation3 [shape = 's32[2]{0}', space=sflag, size = 0x8, scoped, tag = 'scoped memory for tpu_custom_call.1']
    #allocation4 [shape = 's32[2]{0}', space=sflag, size = 0x8, scoped, tag = 'scoped memory for tpu_custom_call.1']
    #allocation5 [shape = 'u8[131072]{0}', space=vmem, size = 0x20000, scoped, tag = 'input window, operand 3']
    #allocation6 [shape = 's32[2]{0}', space=sflag, size = 0x8, scoped, tag = 'scoped memory for tpu_custom_call.1']
    #allocation7 [shape = 'u8[8192]{0}', space=vmem, size = 0x2000, scoped, tag = 'output window, operand 0']
    %10 = vsyncpa [#allocation3], 0
    %s11 = scalar_lea.sflag [#allocation3], 1
    %12 = vsyncpa %s11, 0
    %13 = vsyncpa [#allocation6], 0
    %s14 = scalar_lea.sflag [#allocation6], 1
    %15 = vsyncpa %s14, 0
    %16 = vsyncpa [#allocation4], 0
    %s17 = scalar_lea.sflag [#allocation4], 1
    %18 = vsyncpa %s17, 0
    loop: start=0, step=1, limit=8
    $region2: #{tpu_custom_call.1} parent=1 // loop_pre_header
      _
    $region3: #{tpu_custom_call.1} parent=1 // loop_header
      %s20 = sphi 0, %s24
      %p21 = scmp.ge.s32.totalorder %s20, 8
      %s27 = sphi 0, %s39
      %s28 = sphi 0, %s35
      %s29 = sphi 0, %s27
      %s30 = sphi 0, %s28
      %s31 = sphi 0, %s29
      %s32 = sphi 0, %s30
      %s44 = sphi 0, %s46
      %s47 = sphi 0, %s44
      %s48 = sphi 0, %s47
      %s64 = sphi 0, %s48
      %s70 = sphi 0, %s72
      %s73 = sphi 0, %s70
      %s74 = sphi 0, %s73
      %s90 = sphi 0, %s74
      %s96 = sphi 0, %s98
      %s99 = sphi 0, %s96
      %s100 = sphi 0, %s99
      %s116 = sphi 0, %s100
      %s122 = sphi 0, %s124
      %s125 = sphi 0, %s122
      %s126 = sphi 0, %s125
      %s142 = sphi 0, %s126
      %s146 = sphi 0, %s146
      %s148 = sphi 0, %s146
      %s149 = sphi 0, %s148
      %s163 = sphi 0, %s149
      %s169 = sphi 0, %s171
      %s172 = sphi 0, %s169
      %s173 = sphi 0, %s172
      %s189 = sphi 0, %s173
    $region4: #{tpu_custom_call.1} parent=1 // loop_header_branch
      %23 = sbr.rel (%p21) target = $region8
    $region5: #{tpu_custom_call.1} parent=1 // loop_body
      %s25 = ssub.s32 %s20, 1
      %s26 = ssub.s32 %s20, 2
      %s33 = sadd.s32 1, %s28
      %p34 = scmp.ge.s32.totalorder %s33, 2
      %s35 = scalar_select %p34, 0, %s33
      %s36 = sadd.s32 1, %s27
      %s37 = scalar_select %p34, %s36, %s27
      %p38 = scmp.ge.s32.totalorder %s37, 3
      %s39 = scalar_select %p38, 0, %s37
      %s40 = ssub.s32 %s27, %s39
      %s41 = ssub.s32 %s28, %s35
      %s42 = sor.u32 %s40, %s41
      %p43 = scmp.eq.s32.totalorder %s42, 0
      %s45 = sadd.s32 %s44, 1
      %s46 = scalar_select %p43, %s44, %s45
      %p49 = pneg %p43
      %p50 = scmp.eq.s32.totalorder %s20, 5
      %p51 = por %p49, %p50
      %p52 = scmp.ne.s32.totalorder %s44, %s47
      %p53 = scmp.eq.s32.totalorder %s20, 0
      %p54 = por %p52, %p53
      %p55 = scmp.ne.s32.totalorder %s44, %s47
      %p56 = scmp.eq.s32.totalorder %s25, 5
      %p57 = por %p55, %p56
      %p58 = scmp.ne.s32.totalorder %s47, %s48
      %p59 = scmp.eq.s32.totalorder %s25, 0
      %p60 = por %p58, %p59
      %p61 = scmp.ne.s32.totalorder %s47, %s48
      %p62 = scmp.eq.s32.totalorder %s26, 5
      %p63 = por %p61, %p62
      %p65 = scmp.ne.s32.totalorder %s48, %s64
      %p66 = scmp.eq.s32.totalorder %s26, 0
      %p67 = por %p65, %p66
      %s68 = ssub.s32 %s28, %s35
      %p69 = scmp.eq.s32.totalorder %s68, 0
      %s71 = sadd.s32 %s70, 1
      %s72 = scalar_select %p69, %s70, %s71
      %p75 = pneg %p69
      %p76 = scmp.eq.s32.totalorder %s20, 5
      %p77 = por %p75, %p76
      %p78 = scmp.ne.s32.totalorder %s70, %s73
      %p79 = scmp.eq.s32.totalorder %s20, 0
      %p80 = por %p78, %p79
      %p81 = scmp.ne.s32.totalorder %s70, %s73
      %p82 = scmp.eq.s32.totalorder %s25, 5
      %p83 = por %p81, %p82
      %p84 = scmp.ne.s32.totalorder %s73, %s74
      %p85 = scmp.eq.s32.totalorder %s25, 0
      %p86 = por %p84, %p85
      %p87 = scmp.ne.s32.totalorder %s73, %s74
      %p88 = scmp.eq.s32.totalorder %s26, 5
      %p89 = por %p87, %p88
      %p91 = scmp.ne.s32.totalorder %s74, %s90
      %p92 = scmp.eq.s32.totalorder %s26, 0
      %p93 = por %p91, %p92
      %s94 = ssub.s32 %s28, %s35
      %p95 = scmp.eq.s32.totalorder %s94, 0
      %s97 = sadd.s32 %s96, 1
      %s98 = scalar_select %p95, %s96, %s97
      %p101 = pneg %p95
      %p102 = scmp.eq.s32.totalorder %s20, 5
      %p103 = por %p101, %p102
      %p104 = scmp.ne.s32.totalorder %s96, %s99
      %p105 = scmp.eq.s32.totalorder %s20, 0
      %p106 = por %p104, %p105
      %p107 = scmp.ne.s32.totalorder %s96, %s99
      %p108 = scmp.eq.s32.totalorder %s25, 5
      %p109 = por %p107, %p108
      %p110 = scmp.ne.s32.totalorder %s99, %s100
      %p111 = scmp.eq.s32.totalorder %s25, 0
      %p112 = por %p110, %p111
      %p113 = scmp.ne.s32.totalorder %s99, %s100
      %p114 = scmp.eq.s32.totalorder %s26, 5
      %p115 = por %p113, %p114
      %p117 = scmp.ne.s32.totalorder %s100, %s116
      %p118 = scmp.eq.s32.totalorder %s26, 0
      %p119 = por %p117, %p118
      %s120 = ssub.s32 %s28, %s35
      %p121 = scmp.eq.s32.totalorder %s120, 0
      %s123 = sadd.s32 %s122, 1
      %s124 = scalar_select %p121, %s122, %s123
      %p127 = pneg %p121
      %p128 = scmp.eq.s32.totalorder %s20, 5
      %p129 = por %p127, %p128
      %p130 = scmp.ne.s32.totalorder %s122, %s125
      %p131 = scmp.eq.s32.totalorder %s20, 0
      %p132 = por %p130, %p131
      %p133 = scmp.ne.s32.totalorder %s122, %s125
      %p134 = scmp.eq.s32.totalorder %s25, 5
      %p135 = por %p133, %p134
      %p136 = scmp.ne.s32.totalorder %s125, %s126
      %p137 = scmp.eq.s32.totalorder %s25, 0
      %p138 = por %p136, %p137
      %p139 = scmp.ne.s32.totalorder %s125, %s126
      %p140 = scmp.eq.s32.totalorder %s26, 5
      %p141 = por %p139, %p140
      %p143 = scmp.ne.s32.totalorder %s126, %s142
      %p144 = scmp.eq.s32.totalorder %s26, 0
      %p145 = por %p143, %p144
      %s147 = sadd.s32 %s146, 1
      %p150 = scmp.eq.s32.totalorder %s20, 5
      %p151 = scmp.ne.s32.totalorder %s146, %s148
      %p152 = scmp.eq.s32.totalorder %s20, 0
      %p153 = por %p151, %p152
      %p154 = scmp.ne.s32.totalorder %s146, %s148
      %p155 = scmp.eq.s32.totalorder %s25, 5
      %p156 = por %p154, %p155
      %p157 = scmp.ne.s32.totalorder %s148, %s149
      %p158 = scmp.eq.s32.totalorder %s25, 0
      %p159 = por %p157, %p158
      %p160 = scmp.ne.s32.totalorder %s148, %s149
      %p161 = scmp.eq.s32.totalorder %s26, 5
      %p162 = por %p160, %p161
      %p164 = scmp.ne.s32.totalorder %s149, %s163
      %p165 = scmp.eq.s32.totalorder %s26, 0
      %p166 = por %p164, %p165
      %s167 = ssub.s32 %s27, %s39
      %p168 = scmp.eq.s32.totalorder %s167, 0
      %s170 = sadd.s32 %s169, 1
      %s171 = scalar_select %p168, %s169, %s170
      %p174 = pneg %p168
      %p175 = scmp.eq.s32.totalorder %s20, 5
      %p176 = por %p174, %p175
      %p177 = scmp.ne.s32.totalorder %s169, %s172
      %p178 = scmp.eq.s32.totalorder %s20, 0
      %p179 = por %p177, %p178
      %p180 = scmp.ne.s32.totalorder %s169, %s172
      %p181 = scmp.eq.s32.totalorder %s25, 5
      %p182 = por %p180, %p181
      %p183 = scmp.ne.s32.totalorder %s172, %s173
      %p184 = scmp.eq.s32.totalorder %s25, 0
      %p185 = por %p183, %p184
      %p186 = scmp.ne.s32.totalorder %s172, %s173
      %p187 = scmp.eq.s32.totalorder %s26, 5
      %p188 = por %p186, %p187
      %p190 = scmp.ne.s32.totalorder %s173, %s189
      %p191 = scmp.eq.s32.totalorder %s26, 0
      %p192 = por %p190, %p191
      %p193 = scmp.le.s32.totalorder 1, %s20
      %p194 = scmp.lt.s32.totalorder %s20, 7
      %p195 = pnand %p193, %p194
      %p196 = pneg %p195
      // Predicated region
      $region9: #{tpu_custom_call.1} parent=5 // pred_check
        _
      $region10: #{tpu_custom_call.1} parent=5 // pred_check_branch
        %198 = sbr.rel (%p195) target = $region12
      $region11: #{tpu_custom_call.1} parent=5 // pred_region
        %s199 = ssub.s32 %s20, 1
        // Predicated region
        $region13: #{tpu_custom_call.1} parent=11 // pred_check
          %p200 = pneg %p159
        $region14: #{tpu_custom_call.1} parent=11 // pred_check_branch
          %202 = sbr.rel (%p200) target = $region16
        $region15: #{tpu_custom_call.1} parent=11 // pred_region
          _
        $region16: #{tpu_custom_call.1} parent=11 // pred_fallthru
          _
      $region12: #{tpu_custom_call.1} parent=5 // pred_fallthru
        _
      %p203 = scmp.lt.s32.totalorder %s20, 6
      // Predicated region
      $region17: #{tpu_custom_call.1} parent=5 // pred_check
        %p204 = pneg %p203
      $region18: #{tpu_custom_call.1} parent=5 // pred_check_branch
        %206 = sbr.rel (%p204) target = $region20
      $region19: #{tpu_custom_call.1} parent=5 // pred_region
        // Predicated region
        $region21: #{tpu_custom_call.1} parent=19 // pred_check
          %p207 = pneg %p54
        $region22: #{tpu_custom_call.1} parent=19 // pred_check_branch
          %209 = sbr.rel (%p207) target = $region24
        $region23: #{tpu_custom_call.1} parent=19 // pred_region
          %s210 = sand.u32 %s44, 1
          %s211 = scalar_lea.sflag [#allocation3], %s210
          %s212 = sand.u32 %s44, 1
          %s213 = smul.addr %s212, 8
          %s214 = scalar_lea.vmem [#allocation2], %s213
          %s216 = ssub.s32 128, 128
          %217 = vsyncadd %s211, %s216
          %s218 = smul.addr %s27, 2
          %s219 = sadd.s32 %s28, %s218
          %s220 = smul.addr %s219, 128
          %s221 = scalar_lea.hbm %s0, %s220
          %s223 = sshll.u32 %s214, 4
          %s224 = int_to_ptr.vmem [resolvable:$true] %s223
          %226 = dma.hbm_to_vmem [thread:$0]  %s221, 128, %s224, %s211
        $region24: #{tpu_custom_call.1} parent=19 // pred_fallthru
          _
        // Predicated region
        $region25: #{tpu_custom_call.1} parent=19 // pred_check
          %p227 = pneg %p80
        $region26: #{tpu_custom_call.1} parent=19 // pred_check_branch
          %229 = sbr.rel (%p227) target = $region28
        $region27: #{tpu_custom_call.1} parent=19 // pred_region
          %p230 = scmp.lt.s32.totalorder %s28, 1
          %s231 = scalar_select %p230, %s28, 1
          %s232 = scalar_lea.vmem %s1, %s231
        $region28: #{tpu_custom_call.1} parent=19 // pred_fallthru
          _
        // Predicated region
        $region29: #{tpu_custom_call.1} parent=19 // pred_check
          %p233 = pneg %p106
        $region30: #{tpu_custom_call.1} parent=19 // pred_check_branch
          %235 = sbr.rel (%p233) target = $region32
        $region31: #{tpu_custom_call.1} parent=19 // pred_region
          %p236 = scmp.lt.s32.totalorder %s28, 1
          %s237 = scalar_select %p236, %s28, 1
          %s238 = scalar_lea.vmem %s2, %s237
        $region32: #{tpu_custom_call.1} parent=19 // pred_fallthru
          _
        // Predicated region
        $region33: #{tpu_custom_call.1} parent=19 // pred_check
          %p239 = pneg %p132
        $region34: #{tpu_custom_call.1} parent=19 // pred_check_branch
          %241 = sbr.rel (%p239) target = $region36
        $region35: #{tpu_custom_call.1} parent=19 // pred_region
          %s242 = sand.u32 %s122, 1
          %s243 = scalar_lea.sflag [#allocation6], %s242
          %s244 = sand.u32 %s122, 1
          %s245 = smul.addr %s244, 128
          %s246 = scalar_lea.vmem [#allocation5], %s245
          %s247 = smul.u32 16, %s28
          %s249 = ssub.s32 2048, 2048
          %250 = vsyncadd %s243, %s249
          %s251 = smul.addr %s247, 128
          %s252 = scalar_lea.hbm %s3, %s251
          %s253 = sshll.u32 %s246, 4
          %s254 = int_to_ptr.vmem [resolvable:$true] %s253
          %259 = dma.hbm_to_vmem [thread:$0]  %s252, 2048, %s254, %s243, 128, 128, 8
        $region36: #{tpu_custom_call.1} parent=19 // pred_fallthru
          _
      $region20: #{tpu_custom_call.1} parent=5 // pred_fallthru
        _
      %p260 = scmp.le.s32.totalorder 1, %s20
      %p261 = scmp.lt.s32.totalorder %s20, 7
      %p262 = pnand %p260, %p261
      %p263 = pneg %p262
      // Predicated region
      $region37: #{tpu_custom_call.1} parent=5 // pred_check
        _
      $region38: #{tpu_custom_call.1} parent=5 // pred_check_branch
        %265 = sbr.rel (%p262) target = $region40
      $region39: #{tpu_custom_call.1} parent=5 // pred_region
        %s266 = ssub.s32 %s20, 1
        %s267 = sand.u32 %s47, 1
        %s268 = scalar_lea.sflag [#allocation3], %s267
        %s269 = sand.u32 %s47, 1
        %s270 = smul.addr %s269, 8
        %s271 = scalar_lea.vmem [#allocation2], %s270
        // Predicated region
        $region41: #{tpu_custom_call.1} parent=39 // pred_check
          %p272 = pneg %p60
        $region42: #{tpu_custom_call.1} parent=39 // pred_check_branch
          %274 = sbr.rel (%p272) target = $region44
        $region43: #{tpu_custom_call.1} parent=39 // pred_region
          %275 = dma.done %s268, 128
        $region44: #{tpu_custom_call.1} parent=39 // pred_fallthru
          _
        %s276 = sand.u32 %s125, 1
        %s277 = scalar_lea.sflag [#allocation6], %s276
        %s278 = sand.u32 %s125, 1
        %s279 = smul.addr %s278, 128
        %s280 = scalar_lea.vmem [#allocation5], %s279
        // Predicated region
        $region45: #{tpu_custom_call.1} parent=39 // pred_check
          %p281 = pneg %p138
        $region46: #{tpu_custom_call.1} parent=39 // pred_check_branch
          %283 = sbr.rel (%p281) target = $region48
        $region47: #{tpu_custom_call.1} parent=39 // pred_region
          %284 = dma.done %s277, 2048
        $region48: #{tpu_custom_call.1} parent=39 // pred_fallthru
          _
        %s285 = sand.u32 %s47, 1
        %s286 = scalar_lea.sflag [#allocation3], %s285
        %s287 = sand.u32 %s47, 1
        %s288 = smul.addr %s287, 8
        %s289 = scalar_lea.vmem [#allocation2], %s288
        %p290 = pneg %p60
        %p291 = pneg %p57
        %p292 = scmp.lt.s32.totalorder %s30, 1
        %s293 = scalar_select %p292, %s30, 1
        %s294 = scalar_lea.vmem %s1, %s293
        %p295 = pneg %p86
        %p296 = pneg %p83
        %p297 = scmp.lt.s32.totalorder %s30, 1
        %s298 = scalar_select %p297, %s30, 1
        %s299 = scalar_lea.vmem %s2, %s298
        %p300 = pneg %p112
        %p301 = pneg %p109
        %s302 = sand.u32 %s125, 1
        %s303 = scalar_lea.sflag [#allocation6], %s302
        %s304 = sand.u32 %s125, 1
        %s305 = smul.addr %s304, 128
        %s306 = scalar_lea.vmem [#allocation5], %s305
        %p307 = pneg %p138
        %p308 = pneg %p135
        %p309 = pneg %p159
        %p310 = pneg %p156
        %p311 = pneg %p185
        %p312 = pneg %p182
        %s313 = sand.u32 %s172, 1
        %s314 = scalar_lea.sflag [#allocation4], %s313
        %s315 = sand.u32 %s172, 1
        %s316 = smul.addr %s315, 8
        %s317 = scalar_lea.vmem [#allocation7], %s316
        %p318 = scmp.lt.s32.totalorder %s30, 1
        %s319 = scalar_select %p318, %s30, 1
        %s320 = scalar_lea.vmem %s1, %s319
        %p321 = scmp.lt.s32.totalorder %s30, 1
        %s322 = scalar_select %p321, %s30, 1
        %s323 = scalar_lea.vmem %s2, %s322
        %s324 = smul.u32 16, %s30
        %p325 = scmp.eq.s32.totalorder %s30, 0
        // Predicated region
        $region49: #{tpu_custom_call.1} parent=39 // pred_check
          %p326 = pneg %p325
        $region50: #{tpu_custom_call.1} parent=39 // pred_check_branch
          %328 = sbr.rel (%p326) target = $region52
        $region51: #{tpu_custom_call.1} parent=39 // pred_region
          %v329 = vld [vmem:[%s4] sm:$0x1]
          %v331 = vlaneseq
          %v332 = vshrl.u32 %v331, 7
          %v333 = vsub.s32 0, %v332
          %v334 = vrot.slane %v329, %v333
          %336 = vst [vmem:[%s317] sm:$0xff] %v334
        $region52: #{tpu_custom_call.1} parent=39 // pred_fallthru
          _
        %v337 = vld [vmem:[%s271] sm:$0xff]
        %v338 = vld [vmem:[%s320] sm:$0x1]
        %v340 = vlaneseq
        %v341 = vshrl.u32 %v340, 7
        %v342 = vsub.s32 0, %v341
        %v343 = vrot.slane %v338, %v342
        %v345 = vmul.f32 %v337, %v343
        %v346 = vld [vmem:[%s323] sm:$0x1]
        %v348 = vlaneseq
        %v349 = vshrl.u32 %v348, 7
        %v350 = vsub.s32 0, %v349
        %v351 = vrot.slane %v346, %v350
        %v353 = vadd.f32 %v345, %v351
        %v354 = vld [vmem:[%s317] sm:$0xff]
        %v355 = vand.u32 2147483647, %v353
        %vm356 = vcmp.le.f32.partialorder %v355, 0.7853982
        %vm357 = vcmp.lt.s32.totalorder %v353, 0
        %v358 = vand.u32 %v353, 2139095040
        %v359 = vshrl.u32 %v358, 23
        %v360 = vsub.s32 %v359, 127
        %v361 = vand.u32 2147483647, %v353
        %v362 = vand.u32 %v361, 8388607
        %v363 = vor.u32 %v362, 8388608
        %v364 = vsub.s32 0, %v363
        %v365 = vadd.s32 %v360, 1
        %vm366 = vcmp.gt.s32.totalorder %v365, 0
        %v367 = vsel %vm366, %v365, 0
        %v368 = vshrl.u32 %v367, 5
        %v369 = vand.u32 %v367, 31
        %v370 = vsub.s32 32, %v369
        %v371 = vshrl.u32 683565275, %v370
        %v372 = vshll.u32 683565275, %v369
        %v373 = vshrl.u32 2475754826, %v370
        %v374 = vor.u32 %v372, %v373
        %v375 = vshll.u32 2475754826, %v369
        %v376 = vshrl.u32 2131351028, %v370
        %v377 = vor.u32 %v375, %v376
        %v378 = vshll.u32 2131351028, %v369
        %v379 = vshrl.u32 2102212464, %v370
        %v380 = vor.u32 %v378, %v379
        %v381 = vshll.u32 2102212464, %v369
        %v382 = vshrl.u32 920167782, %v370
        %v383 = vor.u32 %v381, %v382
        %v384 = vshll.u32 920167782, %v369
        %v385 = vshrl.u32 1326507024, %v370
        %v386 = vor.u32 %v384, %v385
        %vm387 = vcmp.lt.s32.totalorder %v368, 1
        %vm388 = vcmp.lt.s32.totalorder %v368, 2
        %vm389 = vcmp.lt.s32.totalorder %v368, 3
        %vm390 = vcmp.lt.s32.totalorder %v368, 4
        %v391 = vsel %vm387, %v371, %v374
        %v392 = vsel %vm390, %v380, 2102212464
        %v393 = vsel %vm389, %v377, %v392
        %v394 = vsel %vm388, %v391, %v393
        %v395 = vsel %vm387, %v374, %v377
        %v396 = vsel %vm390, %v383, 920167782
        %v397 = vsel %vm389, %v380, %v396
        %v398 = vsel %vm388, %v395, %v397
        %v399 = vsel %vm387, %v377, %v380
        %v400 = vsel %vm390, %v386, 1326507024
        %v401 = vsel %vm389, %v383, %v400
        %v402 = vsel %vm388, %v399, %v401
        %v403 = vshll.u32 %v363, 8
        %v404 = vmul.u32.u64.compose %v403, %v402
        %v405 = vextract.low.u32 %v404
        %v406 = vextract.high.u32 %v404
        %v407 = vmul.u32.u64.compose %v403, %v398
        %v408 = vextract.low.u32 %v407
        %v409 = vextract.high.u32 %v407
        %v410 = vmul.u32 %v403, %v394
        %v411 = vadd.s32 %v406, %v408
        %vm412 = vc.u32 %v406, %v408
        %v413 = vadd.s32 %v409, 1
        %v414 = vsel %vm412, %v413, %v409
        %v415 = vadd.s32 %v410, %v414
        %v416 = vadd.s32 %v415, 536870912
        %v417 = vshrl.u32 %v416, 30
        %v418 = vshll.u32 %v417, 30
        %v419 = vsub.s32 %v415, %v418
        %vm420 = vcmp.lt.s32.totalorder %v419, 0
        %v421 = vsub.s32 0, %v419
        %v422 = vsel %vm420, %v421, %v419
        %v423 = vclz %v422
        %v424 = vsub.s32 %v423, 2
        %vm425 = vcmp.gt.s32.totalorder 0, %v424
        %v426 = vsel %vm425, 0, %v424
        %v427 = vsub.s32 32, %v426
        %v428 = vshll.u32 %v419, %v426
        %v429 = vshrl.u32 %v411, %v427
        %v430 = vor.u32 %v428, %v429
        %v431 = vsub.s32 4294967266, %v426
        %v432 = vadd.s32 %v431, 127
        %v433 = vshll.u32 %v432, 23
        %v434 = vor.u32 4788187, %v433
        %v435 = vand.u32 2147483647, %v434
        %v437 = vcvt.s32.f32 %v430
        %v438 = vmul.f32 %v437, %v435
        %v439 = vxor.u32 %v438, 2147483648
        %v440 = vsel %vm357, %v439, %v438
        %v441 = vsub.s32 4, %v417
        %v442 = vsel %vm357, %v441, %v417
        %v443 = vsel %vm356, %v353, %v440
        %v444 = vsel %vm356, 0, %v442
        %v445 = vcosq.f32.pop %v443
        %v446 = vsinq.f32.pop %v443
        %vm447 = vweird.f32 %v353
        %v448 = vadd.s32 %v444, 3
        %v449 = vand.u32 %v448, 3
        %vm450 = vcmp.lt.s32.totalorder %v449, 2
        %vm451 = vcmp.eq.s32.totalorder %v449, 0
        %v452 = vxor.u32 %v446, 2147483648
        %v453 = vsel %vm451, %v445, %v452
        %vm454 = vcmp.eq.s32.totalorder %v449, 2
        %v455 = vxor.u32 %v445, 2147483648
        %v456 = vsel %vm454, %v455, %v446
        %v457 = vsel %vm450, %v453, %v456
        %v458 = vsel %vm447, nan, %v457
        %v459 = vld [vmem:[%s280] sm:$0xff]
        %v460 = vld [vmem:[%s280 + $0x8] sm:$0xff]
        %v461 = vld [vmem:[%s280 + $0x10] sm:$0xff]
        %v462 = vld [vmem:[%s280 + $0x18] sm:$0xff]
        %v463 = vld [vmem:[%s280 + $0x20] sm:$0xff]
        %v464 = vld [vmem:[%s280 + $0x28] sm:$0xff]
        %v465 = vld [vmem:[%s280 + $0x30] sm:$0xff]
        %v466 = vld [vmem:[%s280 + $0x38] sm:$0xff]
        %v467 = vld [vmem:[%s280 + $0x40] sm:$0xff]
        %v468 = vld [vmem:[%s280 + $0x48] sm:$0xff]
        %v469 = vld [vmem:[%s280 + $0x50] sm:$0xff]
        %v470 = vld [vmem:[%s280 + $0x58] sm:$0xff]
        %v471 = vld [vmem:[%s280 + $0x60] sm:$0xff]
        %v472 = vld [vmem:[%s280 + $0x68] sm:$0xff]
        %v473 = vld [vmem:[%s280 + $0x70] sm:$0xff]
        %v474 = vld [vmem:[%s280 + $0x78] sm:$0xff]
        %475 = vmatprep.subr.mxu0 0.0
        %476 = vmatpush1.msra.mxu0 %v459
        %477 = vmatprep.subr.mxu0 0.0
        %478 = vmatpush1.msra.mxu0 %v460
        %479 = vmatprep.subr.mxu0 0.0
        %480 = vmatpush1.msra.mxu0 %v461
        %481 = vmatprep.subr.mxu0 0.0
        %482 = vmatpush1.msra.mxu0 %v462
        %483 = vmatprep.subr.mxu0 0.0
        %484 = vmatpush1.msra.mxu0 %v463
        %485 = vmatprep.subr.mxu0 0.0
        %486 = vmatpush1.msra.mxu0 %v464
        %487 = vmatprep.subr.mxu0 0.0
        %488 = vmatpush1.msra.mxu0 %v465
        %489 = vmatprep.subr.mxu0 0.0
        %490 = vmatpush1.msra.mxu0 %v466
        %491 = vmatprep.subr.mxu0 0.0
        %492 = vmatpush1.msra.mxu0 %v467
        %493 = vmatprep.subr.mxu0 0.0
        %494 = vmatpush1.msra.mxu0 %v468
        %495 = vmatprep.subr.mxu0 0.0
        %496 = vmatpush1.msra.mxu0 %v469
        %497 = vmatprep.subr.mxu0 0.0
        %498 = vmatpush1.msra.mxu0 %v470
        %499 = vmatprep.subr.mxu0 0.0
        %500 = vmatpush1.msra.mxu0 %v471
        %501 = vmatprep.subr.mxu0 0.0
        %502 = vmatpush1.msra.mxu0 %v472
        %503 = vmatprep.subr.mxu0 0.0
        %504 = vmatpush1.msra.mxu0 %v473
        %505 = vmatprep.subr.mxu0 0.0
        %506 = vmatpush1.msra.mxu0 %v474
        %507 = vmatprep.subr.mxu0 0.0
        %508 = vmatpush1.msra.mxu0 0.0
        %509 = vmatprep.subr.mxu0 0.0
        %510 = vmatpush1.msra.mxu0 0.0
        %511 = vmatprep.subr.mxu0 0.0
        %512 = vmatpush1.msra.mxu0 0.0
        %513 = vmatprep.subr.mxu0 0.0
        %514 = vmatpush1.msra.mxu0 0.0
        %515 = vmatprep.subr.mxu0 0.0
        %516 = vmatpush1.msra.mxu0 0.0
        %517 = vmatprep.subr.mxu0 0.0
        %518 = vmatpush1.msra.mxu0 0.0
        %519 = vmatprep.subr.mxu0 0.0
        %520 = vmatpush1.msra.mxu0 0.0
        %521 = vmatprep.subr.mxu0 0.0
        %522 = vmatpush1.msra.mxu0 0.0
        %523 = vmatprep.subr.mxu0 0.0
        %524 = vmatpush1.msra.mxu0 0.0
        %525 = vmatprep.subr.mxu0 0.0
        %526 = vmatpush1.msra.mxu0 0.0
        %527 = vmatprep.subr.mxu0 0.0
        %528 = vmatpush1.msra.mxu0 0.0
        %529 = vmatprep.subr.mxu0 0.0
        %530 = vmatpush1.msra.mxu0 0.0
        %531 = vmatprep.subr.mxu0 0.0
        %532 = vmatpush1.msra.mxu0 0.0
        %533 = vmatprep.subr.mxu0 0.0
        %534 = vmatpush1.msra.mxu0 0.0
        %535 = vmatprep.subr.mxu0 0.0
        %536 = vmatpush1.msra.mxu0 0.0
        %537 = vmatprep.subr.mxu0 0.0
        %538 = vmatpush1.msra.mxu0 0.0
        %539 = vmatprep.mubr.f32.mxu0 0.0
        %540 = vmatmul.mubr.f32.gmra.mrb[0].mxu0 %v458
        %v541 = vpop.f32.mrb[0].mxu0
        %v542 = vadd.f32 0.0, %v541
        %v543 = vpop.f32.mrb[0].mxu0
        %544 = vdwg.mxu0
        %v545 = vadd.f32 %v354, %v542
        %546 = vst [vmem:[%s317] sm:$0xff] %v545
        %s547 = sand.u32 %s172, 1
        %s548 = scalar_lea.sflag [#allocation4], %s547
        %s549 = sand.u32 %s172, 1
        %s550 = smul.addr %s549, 8
        %s551 = scalar_lea.vmem [#allocation7], %s550
        // Predicated region
        $region53: #{tpu_custom_call.1} parent=39 // pred_check
          %p552 = pneg %p182
        $region54: #{tpu_custom_call.1} parent=39 // pred_check_branch
          %554 = sbr.rel (%p552) target = $region56
        $region55: #{tpu_custom_call.1} parent=39 // pred_region
          %s556 = ssub.s32 128, 128
          %557 = vsyncadd %s548, %s556
          %s558 = smul.addr %s29, 128
          %s559 = scalar_lea.hbm %s5, %s558
          %s561 = sshll.u32 %s551, 4
          %s562 = int_to_ptr.vmem [resolvable:$true] %s561
          %564 = dma.vmem_to_hbm [thread:$0]  %s562, 128, %s559, %s548
        $region56: #{tpu_custom_call.1} parent=39 // pred_fallthru
          _
      $region40: #{tpu_custom_call.1} parent=5 // pred_fallthru
        _
      %p565 = scmp.le.s32.totalorder 2, %s20
      // Predicated region
      $region57: #{tpu_custom_call.1} parent=5 // pred_check
        %p566 = pneg %p565
      $region58: #{tpu_custom_call.1} parent=5 // pred_check_branch
        %568 = sbr.rel (%p566) target = $region60
      $region59: #{tpu_custom_call.1} parent=5 // pred_region
        %s569 = ssub.s32 %s20, 2
        // Predicated region
        $region61: #{tpu_custom_call.1} parent=59 // pred_check
          %p570 = pneg %p188
        $region62: #{tpu_custom_call.1} parent=59 // pred_check_branch
          %572 = sbr.rel (%p570) target = $region64
        $region63: #{tpu_custom_call.1} parent=59 // pred_region
          %s573 = sand.u32 %s173, 1
          %s574 = scalar_lea.sflag [#allocation4], %s573
          %s575 = sand.u32 %s173, 1
          %s576 = smul.addr %s575, 8
          %s577 = scalar_lea.vmem [#allocation7], %s576
          %578 = dma.done %s574, 128
        $region64: #{tpu_custom_call.1} parent=59 // pred_fallthru
          _
      $region60: #{tpu_custom_call.1} parent=5 // pred_fallthru
        _
    $region6: #{tpu_custom_call.1} parent=1 // loop_footer
      %s24 = sadd.s32 1, %s20
    $region7: #{tpu_custom_call.1} parent=1 // loop_footer_branch
      %19 = sbr.rel target = $region3
    $region8: #{tpu_custom_call.1} parent=1 // loop_exit
      _
    %579 = vsyncpa [#allocation3], 1
    %s580 = scalar_lea.sflag [#allocation3], 1
    %581 = vsyncpa %s580, 1
    %582 = vsyncpa [#allocation6], 1
    %s583 = scalar_lea.sflag [#allocation6], 1
    %584 = vsyncpa %s583, 1
    %585 = vsyncpa [#allocation4], 1
    %s586 = scalar_lea.sflag [#allocation4], 1
    %587 = vsyncpa %s586, 1

// kernel: tpu_custom_call.1
$region0: #{tpu_custom_call.1}
  #allocation0 [shape = 'u32[]', space=smem, size = 0x4, offset = 0x4, fixed_abs, tag = 'smem constant byte address 0x4 - core index']
  #allocation1 [shape = 'u32[144,128]{1,0:T(1,128)}', space=vmem, size = 0x12000, scoped, tag = 'internal scratch']
  %s0 = inlined_call_operand.hbm [shape: f32[24,256], index: 0, kind: input, shape index: {}]
  %s1 = inlined_call_operand.vmem [shape: f32[1,256], index: 1, kind: input, shape index: {}]
  %s2 = inlined_call_operand.vmem [shape: f32[1,256], index: 2, kind: input, shape index: {}]
  %s3 = inlined_call_operand.hbm [shape: f32[256,128], index: 3, kind: input, shape index: {}]
  %s4 = inlined_call_operand.vmem [shape: f32[1,128], index: 4, kind: input, shape index: {}]
  %s5 = inlined_call_operand.hbm [shape: f32[24,128], index: 5, kind: output, shape index: {}]
  %s6 = sld [smem:[#allocation0]]
  $region65: #{tpu_custom_call.1} parent=0
    _
  %s8 = ssub.s32 1, %s6
  %s9 = scalar_select 0, %s8, %s6
  $region1: #{tpu_custom_call.1} parent=0
    #allocation2 [shape = 'u8[8192]{0}', space=vmem, size = 0x2000, scoped, tag = 'input window, operand 0']
    #allocation3 [shape = 's32[2]{0}', space=sflag, size = 0x8, scoped, tag = 'scoped memory for tpu_custom_call.1']
    #allocation4 [shape = 's32[2]{0}', space=sflag, size = 0x8, scoped, tag = 'scoped memory for tpu_custom_call.1']
    #allocation5 [shape = 'u8[131072]{0}', space=vmem, size = 0x20000, scoped, tag = 'input window, operand 3']
    #allocation6 [shape = 's32[2]{0}', space=sflag, size = 0x8, scoped, tag = 'scoped memory for tpu_custom_call.1']
    #allocation7 [shape = 'u8[8192]{0}', space=vmem, size = 0x2000, scoped, tag = 'output window, operand 0']
    %10 = vsyncpa [#allocation3], 0
    %s11 = scalar_lea.sflag [#allocation3], 1
    %12 = vsyncpa %s11, 0
    %13 = vsyncpa [#allocation6], 0
    %s14 = scalar_lea.sflag [#allocation6], 1
    %15 = vsyncpa %s14, 0
    %16 = vsyncpa [#allocation4], 0
    %s17 = scalar_lea.sflag [#allocation4], 1
    %18 = vsyncpa %s17, 0
    loop: start=0, step=1, limit=8
    $region2: #{tpu_custom_call.1} parent=1 // loop_pre_header
      _
    $region3: #{tpu_custom_call.1} parent=1 // loop_header
      %s20 = sphi 0, %s24
      %p21 = scmp.ge.s32.totalorder %s20, 8
      %s27 = sphi 0, %s39
      %s28 = sphi 0, %s35
      %s29 = sphi 0, %s27
      %s30 = sphi 0, %s28
      %s31 = sphi 0, %s29
      %s32 = sphi 0, %s30
      %s44 = sphi 0, %s46
      %s47 = sphi 0, %s44
      %s48 = sphi 0, %s47
      %s64 = sphi 0, %s48
      %s70 = sphi 0, %s72
      %s73 = sphi 0, %s70
      %s74 = sphi 0, %s73
      %s90 = sphi 0, %s74
      %s96 = sphi 0, %s98
      %s99 = sphi 0, %s96
      %s100 = sphi 0, %s99
      %s116 = sphi 0, %s100
      %s122 = sphi 0, %s124
      %s125 = sphi 0, %s122
      %s126 = sphi 0, %s125
      %s142 = sphi 0, %s126
      %s146 = sphi 0, %s146
      %s148 = sphi 0, %s146
      %s149 = sphi 0, %s148
      %s163 = sphi 0, %s149
      %s169 = sphi 0, %s171
      %s172 = sphi 0, %s169
      %s173 = sphi 0, %s172
      %s189 = sphi 0, %s173
    $region4: #{tpu_custom_call.1} parent=1 // loop_header_branch
      %23 = sbr.rel (%p21) target = $region8
    $region5: #{tpu_custom_call.1} parent=1 // loop_body
      %s25 = ssub.s32 %s20, 1
      %s26 = ssub.s32 %s20, 2
      %s33 = sadd.s32 1, %s28
      %p34 = scmp.ge.s32.totalorder %s33, 2
      %s35 = scalar_select %p34, 0, %s33
      %s36 = sadd.s32 1, %s27
      %s37 = scalar_select %p34, %s36, %s27
      %p38 = scmp.ge.s32.totalorder %s37, 3
      %s39 = scalar_select %p38, 0, %s37
      %s40 = ssub.s32 %s27, %s39
      %s41 = ssub.s32 %s28, %s35
      %s42 = sor.u32 %s40, %s41
      %p43 = scmp.eq.s32.totalorder %s42, 0
      %s45 = sadd.s32 %s44, 1
      %s46 = scalar_select %p43, %s44, %s45
      %p49 = pneg %p43
      %p50 = scmp.eq.s32.totalorder %s20, 5
      %p51 = por %p49, %p50
      %p52 = scmp.ne.s32.totalorder %s44, %s47
      %p53 = scmp.eq.s32.totalorder %s20, 0
      %p54 = por %p52, %p53
      %p55 = scmp.ne.s32.totalorder %s44, %s47
      %p56 = scmp.eq.s32.totalorder %s25, 5
      %p57 = por %p55, %p56
      %p58 = scmp.ne.s32.totalorder %s47, %s48
      %p59 = scmp.eq.s32.totalorder %s25, 0
      %p60 = por %p58, %p59
      %p61 = scmp.ne.s32.totalorder %s47, %s48
      %p62 = scmp.eq.s32.totalorder %s26, 5
      %p63 = por %p61, %p62
      %p65 = scmp.ne.s32.totalorder %s48, %s64
      %p66 = scmp.eq.s32.totalorder %s26, 0
      %p67 = por %p65, %p66
      %s68 = ssub.s32 %s28, %s35
      %p69 = scmp.eq.s32.totalorder %s68, 0
      %s71 = sadd.s32 %s70, 1
      %s72 = scalar_select %p69, %s70, %s71
      %p75 = pneg %p69
      %p76 = scmp.eq.s32.totalorder %s20, 5
      %p77 = por %p75, %p76
      %p78 = scmp.ne.s32.totalorder %s70, %s73
      %p79 = scmp.eq.s32.totalorder %s20, 0
      %p80 = por %p78, %p79
      %p81 = scmp.ne.s32.totalorder %s70, %s73
      %p82 = scmp.eq.s32.totalorder %s25, 5
      %p83 = por %p81, %p82
      %p84 = scmp.ne.s32.totalorder %s73, %s74
      %p85 = scmp.eq.s32.totalorder %s25, 0
      %p86 = por %p84, %p85
      %p87 = scmp.ne.s32.totalorder %s73, %s74
      %p88 = scmp.eq.s32.totalorder %s26, 5
      %p89 = por %p87, %p88
      %p91 = scmp.ne.s32.totalorder %s74, %s90
      %p92 = scmp.eq.s32.totalorder %s26, 0
      %p93 = por %p91, %p92
      %s94 = ssub.s32 %s28, %s35
      %p95 = scmp.eq.s32.totalorder %s94, 0
      %s97 = sadd.s32 %s96, 1
      %s98 = scalar_select %p95, %s96, %s97
      %p101 = pneg %p95
      %p102 = scmp.eq.s32.totalorder %s20, 5
      %p103 = por %p101, %p102
      %p104 = scmp.ne.s32.totalorder %s96, %s99
      %p105 = scmp.eq.s32.totalorder %s20, 0
      %p106 = por %p104, %p105
      %p107 = scmp.ne.s32.totalorder %s96, %s99
      %p108 = scmp.eq.s32.totalorder %s25, 5
      %p109 = por %p107, %p108
      %p110 = scmp.ne.s32.totalorder %s99, %s100
      %p111 = scmp.eq.s32.totalorder %s25, 0
      %p112 = por %p110, %p111
      %p113 = scmp.ne.s32.totalorder %s99, %s100
      %p114 = scmp.eq.s32.totalorder %s26, 5
      %p115 = por %p113, %p114
      %p117 = scmp.ne.s32.totalorder %s100, %s116
      %p118 = scmp.eq.s32.totalorder %s26, 0
      %p119 = por %p117, %p118
      %s120 = ssub.s32 %s28, %s35
      %p121 = scmp.eq.s32.totalorder %s120, 0
      %s123 = sadd.s32 %s122, 1
      %s124 = scalar_select %p121, %s122, %s123
      %p127 = pneg %p121
      %p128 = scmp.eq.s32.totalorder %s20, 5
      %p129 = por %p127, %p128
      %p130 = scmp.ne.s32.totalorder %s122, %s125
      %p131 = scmp.eq.s32.totalorder %s20, 0
      %p132 = por %p130, %p131
      %p133 = scmp.ne.s32.totalorder %s122, %s125
      %p134 = scmp.eq.s32.totalorder %s25, 5
      %p135 = por %p133, %p134
      %p136 = scmp.ne.s32.totalorder %s125, %s126
      %p137 = scmp.eq.s32.totalorder %s25, 0
      %p138 = por %p136, %p137
      %p139 = scmp.ne.s32.totalorder %s125, %s126
      %p140 = scmp.eq.s32.totalorder %s26, 5
      %p141 = por %p139, %p140
      %p143 = scmp.ne.s32.totalorder %s126, %s142
      %p144 = scmp.eq.s32.totalorder %s26, 0
      %p145 = por %p143, %p144
      %s147 = sadd.s32 %s146, 1
      %p150 = scmp.eq.s32.totalorder %s20, 5
      %p151 = scmp.ne.s32.totalorder %s146, %s148
      %p152 = scmp.eq.s32.totalorder %s20, 0
      %p153 = por %p151, %p152
      %p154 = scmp.ne.s32.totalorder %s146, %s148
      %p155 = scmp.eq.s32.totalorder %s25, 5
      %p156 = por %p154, %p155
      %p157 = scmp.ne.s32.totalorder %s148, %s149
      %p158 = scmp.eq.s32.totalorder %s25, 0
      %p159 = por %p157, %p158
      %p160 = scmp.ne.s32.totalorder %s148, %s149
      %p161 = scmp.eq.s32.totalorder %s26, 5
      %p162 = por %p160, %p161
      %p164 = scmp.ne.s32.totalorder %s149, %s163
      %p165 = scmp.eq.s32.totalorder %s26, 0
      %p166 = por %p164, %p165
      %s167 = ssub.s32 %s27, %s39
      %p168 = scmp.eq.s32.totalorder %s167, 0
      %s170 = sadd.s32 %s169, 1
      %s171 = scalar_select %p168, %s169, %s170
      %p174 = pneg %p168
      %p175 = scmp.eq.s32.totalorder %s20, 5
      %p176 = por %p174, %p175
      %p177 = scmp.ne.s32.totalorder %s169, %s172
      %p178 = scmp.eq.s32.totalorder %s20, 0
      %p179 = por %p177, %p178
      %p180 = scmp.ne.s32.totalorder %s169, %s172
      %p181 = scmp.eq.s32.totalorder %s25, 5
      %p182 = por %p180, %p181
      %p183 = scmp.ne.s32.totalorder %s172, %s173
      %p184 = scmp.eq.s32.totalorder %s25, 0
      %p185 = por %p183, %p184
      %p186 = scmp.ne.s32.totalorder %s172, %s173
      %p187 = scmp.eq.s32.totalorder %s26, 5
      %p188 = por %p186, %p187
      %p190 = scmp.ne.s32.totalorder %s173, %s189
      %p191 = scmp.eq.s32.totalorder %s26, 0
      %p192 = por %p190, %p191
      %p193 = scmp.le.s32.totalorder 1, %s20
      %p194 = scmp.lt.s32.totalorder %s20, 7
      %p195 = pnand %p193, %p194
      %p196 = pneg %p195
      // Predicated region
      $region9: #{tpu_custom_call.1} parent=5 // pred_check
        _
      $region10: #{tpu_custom_call.1} parent=5 // pred_check_branch
        %198 = sbr.rel (%p195) target = $region12
      $region11: #{tpu_custom_call.1} parent=5 // pred_region
        %s199 = ssub.s32 %s20, 1
        // Predicated region
        $region13: #{tpu_custom_call.1} parent=11 // pred_check
          %p200 = pneg %p159
        $region14: #{tpu_custom_call.1} parent=11 // pred_check_branch
          %202 = sbr.rel (%p200) target = $region16
        $region15: #{tpu_custom_call.1} parent=11 // pred_region
          _
        $region16: #{tpu_custom_call.1} parent=11 // pred_fallthru
          _
      $region12: #{tpu_custom_call.1} parent=5 // pred_fallthru
        _
      %p203 = scmp.lt.s32.totalorder %s20, 6
      // Predicated region
      $region17: #{tpu_custom_call.1} parent=5 // pred_check
        %p204 = pneg %p203
      $region18: #{tpu_custom_call.1} parent=5 // pred_check_branch
        %206 = sbr.rel (%p204) target = $region20
      $region19: #{tpu_custom_call.1} parent=5 // pred_region
        // Predicated region
        $region21: #{tpu_custom_call.1} parent=19 // pred_check
          %p207 = pneg %p54
        $region22: #{tpu_custom_call.1} parent=19 // pred_check_branch
          %209 = sbr.rel (%p207) target = $region24
        $region23: #{tpu_custom_call.1} parent=19 // pred_region
          %s210 = sand.u32 %s44, 1
          %s211 = scalar_lea.sflag [#allocation3], %s210
          %s212 = sand.u32 %s44, 1
          %s213 = smul.addr %s212, 8
          %s214 = scalar_lea.vmem [#allocation2], %s213
          %s216 = ssub.s32 128, 128
          %217 = vsyncadd %s211, %s216
          %s218 = smul.addr %s27, 2
          %s219 = sadd.s32 %s28, %s218
          %s220 = smul.addr %s219, 128
          %s221 = scalar_lea.hbm %s0, %s220
          %s223 = sshll.u32 %s214, 4
          %s224 = int_to_ptr.vmem [resolvable:$true] %s223
          %226 = dma.hbm_to_vmem [thread:$0]  %s221, 128, %s224, %s211
        $region24: #{tpu_custom_call.1} parent=19 // pred_fallthru
          _
        // Predicated region
        $region25: #{tpu_custom_call.1} parent=19 // pred_check
          %p227 = pneg %p80
        $region26: #{tpu_custom_call.1} parent=19 // pred_check_branch
          %229 = sbr.rel (%p227) target = $region28
        $region27: #{tpu_custom_call.1} parent=19 // pred_region
          %p230 = scmp.lt.s32.totalorder %s28, 1
          %s231 = scalar_select %p230, %s28, 1
          %s232 = scalar_lea.vmem %s1, %s231
        $region28: #{tpu_custom_call.1} parent=19 // pred_fallthru
          _
        // Predicated region
        $region29: #{tpu_custom_call.1} parent=19 // pred_check
          %p233 = pneg %p106
        $region30: #{tpu_custom_call.1} parent=19 // pred_check_branch
          %235 = sbr.rel (%p233) target = $region32
        $region31: #{tpu_custom_call.1} parent=19 // pred_region
          %p236 = scmp.lt.s32.totalorder %s28, 1
          %s237 = scalar_select %p236, %s28, 1
          %s238 = scalar_lea.vmem %s2, %s237
        $region32: #{tpu_custom_call.1} parent=19 // pred_fallthru
          _
        // Predicated region
        $region33: #{tpu_custom_call.1} parent=19 // pred_check
          %p239 = pneg %p132
        $region34: #{tpu_custom_call.1} parent=19 // pred_check_branch
          %241 = sbr.rel (%p239) target = $region36
        $region35: #{tpu_custom_call.1} parent=19 // pred_region
          %s242 = sand.u32 %s122, 1
          %s243 = scalar_lea.sflag [#allocation6], %s242
          %s244 = sand.u32 %s122, 1
          %s245 = smul.addr %s244, 128
          %s246 = scalar_lea.vmem [#allocation5], %s245
          %s247 = smul.u32 16, %s28
          %s249 = ssub.s32 2048, 2048
          %250 = vsyncadd %s243, %s249
          %s251 = smul.addr %s247, 128
          %s252 = scalar_lea.hbm %s3, %s251
          %s253 = sshll.u32 %s246, 4
          %s254 = int_to_ptr.vmem [resolvable:$true] %s253
          %259 = dma.hbm_to_vmem [thread:$0]  %s252, 2048, %s254, %s243, 128, 128, 8
        $region36: #{tpu_custom_call.1} parent=19 // pred_fallthru
          _
      $region20: #{tpu_custom_call.1} parent=5 // pred_fallthru
        _
      %p260 = scmp.le.s32.totalorder 1, %s20
      %p261 = scmp.lt.s32.totalorder %s20, 7
      %p262 = pnand %p260, %p261
      %p263 = pneg %p262
      // Predicated region
      $region37: #{tpu_custom_call.1} parent=5 // pred_check
        _
      $region38: #{tpu_custom_call.1} parent=5 // pred_check_branch
        %265 = sbr.rel (%p262) target = $region40
      $region39: #{tpu_custom_call.1} parent=5 // pred_region
        %s266 = ssub.s32 %s20, 1
        %s267 = sand.u32 %s47, 1
        %s268 = scalar_lea.sflag [#allocation3], %s267
        %s269 = sand.u32 %s47, 1
        %s270 = smul.addr %s269, 8
        %s271 = scalar_lea.vmem [#allocation2], %s270
        // Predicated region
        $region41: #{tpu_custom_call.1} parent=39 // pred_check
          %p272 = pneg %p60
        $region42: #{tpu_custom_call.1} parent=39 // pred_check_branch
          %274 = sbr.rel (%p272) target = $region44
        $region43: #{tpu_custom_call.1} parent=39 // pred_region
          %275 = dma.done %s268, 128
        $region44: #{tpu_custom_call.1} parent=39 // pred_fallthru
          _
        %s276 = sand.u32 %s125, 1
        %s277 = scalar_lea.sflag [#allocation6], %s276
        %s278 = sand.u32 %s125, 1
        %s279 = smul.addr %s278, 128
        %s280 = scalar_lea.vmem [#allocation5], %s279
        // Predicated region
        $region45: #{tpu_custom_call.1} parent=39 // pred_check
          %p281 = pneg %p138
        $region46: #{tpu_custom_call.1} parent=39 // pred_check_branch
          %283 = sbr.rel (%p281) target = $region48
        $region47: #{tpu_custom_call.1} parent=39 // pred_region
          %284 = dma.done %s277, 2048
        $region48: #{tpu_custom_call.1} parent=39 // pred_fallthru
          _
        %s285 = sand.u32 %s47, 1
        %s286 = scalar_lea.sflag [#allocation3], %s285
        %s287 = sand.u32 %s47, 1
        %s288 = smul.addr %s287, 8
        %s289 = scalar_lea.vmem [#allocation2], %s288
        %p290 = pneg %p60
        %p291 = pneg %p57
        %p292 = scmp.lt.s32.totalorder %s30, 1
        %s293 = scalar_select %p292, %s30, 1
        %s294 = scalar_lea.vmem %s1, %s293
        %p295 = pneg %p86
        %p296 = pneg %p83
        %p297 = scmp.lt.s32.totalorder %s30, 1
        %s298 = scalar_select %p297, %s30, 1
        %s299 = scalar_lea.vmem %s2, %s298
        %p300 = pneg %p112
        %p301 = pneg %p109
        %s302 = sand.u32 %s125, 1
        %s303 = scalar_lea.sflag [#allocation6], %s302
        %s304 = sand.u32 %s125, 1
        %s305 = smul.addr %s304, 128
        %s306 = scalar_lea.vmem [#allocation5], %s305
        %p307 = pneg %p138
        %p308 = pneg %p135
        %p309 = pneg %p159
        %p310 = pneg %p156
        %p311 = pneg %p185
        %p312 = pneg %p182
        %s313 = sand.u32 %s172, 1
        %s314 = scalar_lea.sflag [#allocation4], %s313
        %s315 = sand.u32 %s172, 1
        %s316 = smul.addr %s315, 8
        %s317 = scalar_lea.vmem [#allocation7], %s316
        %p318 = scmp.lt.s32.totalorder %s30, 1
        %s319 = scalar_select %p318, %s30, 1
        %s320 = scalar_lea.vmem %s1, %s319
        %p321 = scmp.lt.s32.totalorder %s30, 1
        %s322 = scalar_select %p321, %s30, 1
        %s323 = scalar_lea.vmem %s2, %s322
        %s324 = smul.u32 16, %s30
        %p325 = scmp.eq.s32.totalorder %s30, 0
        // Predicated region
        $region49: #{tpu_custom_call.1} parent=39 // pred_check
          %p326 = pneg %p325
        $region50: #{tpu_custom_call.1} parent=39 // pred_check_branch
          %328 = sbr.rel (%p326) target = $region52
        $region51: #{tpu_custom_call.1} parent=39 // pred_region
          %v329 = vld [vmem:[%s4] sm:$0x1]
          %v331 = vlaneseq
          %v332 = vshrl.u32 %v331, 7
          %v333 = vsub.s32 0, %v332
          %v334 = vrot.slane %v329, %v333
          %336 = vst [vmem:[%s317] sm:$0xff] %v334
        $region52: #{tpu_custom_call.1} parent=39 // pred_fallthru
          _
        %v337 = vld [vmem:[%s271] sm:$0xff]
        %v338 = vld [vmem:[%s320] sm:$0x1]
        %v340 = vlaneseq
        %v341 = vshrl.u32 %v340, 7
        %v342 = vsub.s32 0, %v341
        %v343 = vrot.slane %v338, %v342
        %v345 = vmul.f32 %v337, %v343
        %v346 = vld [vmem:[%s323] sm:$0x1]
        %v348 = vlaneseq
        %v349 = vshrl.u32 %v348, 7
        %v350 = vsub.s32 0, %v349
        %v351 = vrot.slane %v346, %v350
        %v353 = vadd.f32 %v345, %v351
        %v354 = vld [vmem:[%s317] sm:$0xff]
        %v355 = vand.u32 2147483647, %v353
        %vm356 = vcmp.le.f32.partialorder %v355, 0.7853982
        %vm357 = vcmp.lt.s32.totalorder %v353, 0
        %v358 = vand.u32 %v353, 2139095040
        %v359 = vshrl.u32 %v358, 23
        %v360 = vsub.s32 %v359, 127
        %v361 = vand.u32 2147483647, %v353
        %v362 = vand.u32 %v361, 8388607
        %v363 = vor.u32 %v362, 8388608
        %v364 = vsub.s32 0, %v363
        %v365 = vadd.s32 %v360, 1
        %vm366 = vcmp.gt.s32.totalorder %v365, 0
        %v367 = vsel %vm366, %v365, 0
        %v368 = vshrl.u32 %v367, 5
        %v369 = vand.u32 %v367, 31
        %v370 = vsub.s32 32, %v369
        %v371 = vshrl.u32 683565275, %v370
        %v372 = vshll.u32 683565275, %v369
        %v373 = vshrl.u32 2475754826, %v370
        %v374 = vor.u32 %v372, %v373
        %v375 = vshll.u32 2475754826, %v369
        %v376 = vshrl.u32 2131351028, %v370
        %v377 = vor.u32 %v375, %v376
        %v378 = vshll.u32 2131351028, %v369
        %v379 = vshrl.u32 2102212464, %v370
        %v380 = vor.u32 %v378, %v379
        %v381 = vshll.u32 2102212464, %v369
        %v382 = vshrl.u32 920167782, %v370
        %v383 = vor.u32 %v381, %v382
        %v384 = vshll.u32 920167782, %v369
        %v385 = vshrl.u32 1326507024, %v370
        %v386 = vor.u32 %v384, %v385
        %vm387 = vcmp.lt.s32.totalorder %v368, 1
        %vm388 = vcmp.lt.s32.totalorder %v368, 2
        %vm389 = vcmp.lt.s32.totalorder %v368, 3
        %vm390 = vcmp.lt.s32.totalorder %v368, 4
        %v391 = vsel %vm387, %v371, %v374
        %v392 = vsel %vm390, %v380, 2102212464
        %v393 = vsel %vm389, %v377, %v392
        %v394 = vsel %vm388, %v391, %v393
        %v395 = vsel %vm387, %v374, %v377
        %v396 = vsel %vm390, %v383, 920167782
        %v397 = vsel %vm389, %v380, %v396
        %v398 = vsel %vm388, %v395, %v397
        %v399 = vsel %vm387, %v377, %v380
        %v400 = vsel %vm390, %v386, 1326507024
        %v401 = vsel %vm389, %v383, %v400
        %v402 = vsel %vm388, %v399, %v401
        %v403 = vshll.u32 %v363, 8
        %v404 = vmul.u32.u64.compose %v403, %v402
        %v405 = vextract.low.u32 %v404
        %v406 = vextract.high.u32 %v404
        %v407 = vmul.u32.u64.compose %v403, %v398
        %v408 = vextract.low.u32 %v407
        %v409 = vextract.high.u32 %v407
        %v410 = vmul.u32 %v403, %v394
        %v411 = vadd.s32 %v406, %v408
        %vm412 = vc.u32 %v406, %v408
        %v413 = vadd.s32 %v409, 1
        %v414 = vsel %vm412, %v413, %v409
        %v415 = vadd.s32 %v410, %v414
        %v416 = vadd.s32 %v415, 536870912
        %v417 = vshrl.u32 %v416, 30
        %v418 = vshll.u32 %v417, 30
        %v419 = vsub.s32 %v415, %v418
        %vm420 = vcmp.lt.s32.totalorder %v419, 0
        %v421 = vsub.s32 0, %v419
        %v422 = vsel %vm420, %v421, %v419
        %v423 = vclz %v422
        %v424 = vsub.s32 %v423, 2
        %vm425 = vcmp.gt.s32.totalorder 0, %v424
        %v426 = vsel %vm425, 0, %v424
        %v427 = vsub.s32 32, %v426
        %v428 = vshll.u32 %v419, %v426
        %v429 = vshrl.u32 %v411, %v427
        %v430 = vor.u32 %v428, %v429
        %v431 = vsub.s32 4294967266, %v426
        %v432 = vadd.s32 %v431, 127
        %v433 = vshll.u32 %v432, 23
        %v434 = vor.u32 4788187, %v433
        %v435 = vand.u32 2147483647, %v434
        %v437 = vcvt.s32.f32 %v430
        %v438 = vmul.f32 %v437, %v435
        %v439 = vxor.u32 %v438, 2147483648
        %v440 = vsel %vm357, %v439, %v438
        %v441 = vsub.s32 4, %v417
        %v442 = vsel %vm357, %v441, %v417
        %v443 = vsel %vm356, %v353, %v440
        %v444 = vsel %vm356, 0, %v442
        %v445 = vcosq.f32.pop %v443
        %v446 = vsinq.f32.pop %v443
        %vm447 = vweird.f32 %v353
        %v448 = vadd.s32 %v444, 3
        %v449 = vand.u32 %v448, 3
        %vm450 = vcmp.lt.s32.totalorder %v449, 2
        %vm451 = vcmp.eq.s32.totalorder %v449, 0
        %v452 = vxor.u32 %v446, 2147483648
        %v453 = vsel %vm451, %v445, %v452
        %vm454 = vcmp.eq.s32.totalorder %v449, 2
        %v455 = vxor.u32 %v445, 2147483648
        %v456 = vsel %vm454, %v455, %v446
        %v457 = vsel %vm450, %v453, %v456
        %v458 = vsel %vm447, nan, %v457
        %v459 = vld [vmem:[%s280] sm:$0xff]
        %v460 = vld [vmem:[%s280 + $0x8] sm:$0xff]
        %v461 = vld [vmem:[%s280 + $0x10] sm:$0xff]
        %v462 = vld [vmem:[%s280 + $0x18] sm:$0xff]
        %v463 = vld [vmem:[%s280 + $0x20] sm:$0xff]
        %v464 = vld [vmem:[%s280 + $0x28] sm:$0xff]
        %v465 = vld [vmem:[%s280 + $0x30] sm:$0xff]
        %v466 = vld [vmem:[%s280 + $0x38] sm:$0xff]
        %v467 = vld [vmem:[%s280 + $0x40] sm:$0xff]
        %v468 = vld [vmem:[%s280 + $0x48] sm:$0xff]
        %v469 = vld [vmem:[%s280 + $0x50] sm:$0xff]
        %v470 = vld [vmem:[%s280 + $0x58] sm:$0xff]
        %v471 = vld [vmem:[%s280 + $0x60] sm:$0xff]
        %v472 = vld [vmem:[%s280 + $0x68] sm:$0xff]
        %v473 = vld [vmem:[%s280 + $0x70] sm:$0xff]
        %v474 = vld [vmem:[%s280 + $0x78] sm:$0xff]
        %475 = vmatprep.subr.mxu0 0.0
        %476 = vmatpush1.msra.mxu0 %v459
        %477 = vmatprep.subr.mxu0 0.0
        %478 = vmatpush1.msra.mxu0 %v460
        %479 = vmatprep.subr.mxu0 0.0
        %480 = vmatpush1.msra.mxu0 %v461
        %481 = vmatprep.subr.mxu0 0.0
        %482 = vmatpush1.msra.mxu0 %v462
        %483 = vmatprep.subr.mxu0 0.0
        %484 = vmatpush1.msra.mxu0 %v463
        %485 = vmatprep.subr.mxu0 0.0
        %486 = vmatpush1.msra.mxu0 %v464
        %487 = vmatprep.subr.mxu0 0.0
        %488 = vmatpush1.msra.mxu0 %v465
        %489 = vmatprep.subr.mxu0 0.0
        %490 = vmatpush1.msra.mxu0 %v466
        %491 = vmatprep.subr.mxu0 0.0
        %492 = vmatpush1.msra.mxu0 %v467
        %493 = vmatprep.subr.mxu0 0.0
        %494 = vmatpush1.msra.mxu0 %v468
        %495 = vmatprep.subr.mxu0 0.0
        %496 = vmatpush1.msra.mxu0 %v469
        %497 = vmatprep.subr.mxu0 0.0
        %498 = vmatpush1.msra.mxu0 %v470
        %499 = vmatprep.subr.mxu0 0.0
        %500 = vmatpush1.msra.mxu0 %v471
        %501 = vmatprep.subr.mxu0 0.0
        %502 = vmatpush1.msra.mxu0 %v472
        %503 = vmatprep.subr.mxu0 0.0
        %504 = vmatpush1.msra.mxu0 %v473
        %505 = vmatprep.subr.mxu0 0.0
        %506 = vmatpush1.msra.mxu0 %v474
        %507 = vmatprep.subr.mxu0 0.0
        %508 = vmatpush1.msra.mxu0 0.0
        %509 = vmatprep.subr.mxu0 0.0
        %510 = vmatpush1.msra.mxu0 0.0
        %511 = vmatprep.subr.mxu0 0.0
        %512 = vmatpush1.msra.mxu0 0.0
        %513 = vmatprep.subr.mxu0 0.0
        %514 = vmatpush1.msra.mxu0 0.0
        %515 = vmatprep.subr.mxu0 0.0
        %516 = vmatpush1.msra.mxu0 0.0
        %517 = vmatprep.subr.mxu0 0.0
        %518 = vmatpush1.msra.mxu0 0.0
        %519 = vmatprep.subr.mxu0 0.0
        %520 = vmatpush1.msra.mxu0 0.0
        %521 = vmatprep.subr.mxu0 0.0
        %522 = vmatpush1.msra.mxu0 0.0
        %523 = vmatprep.subr.mxu0 0.0
        %524 = vmatpush1.msra.mxu0 0.0
        %525 = vmatprep.subr.mxu0 0.0
        %526 = vmatpush1.msra.mxu0 0.0
        %527 = vmatprep.subr.mxu0 0.0
        %528 = vmatpush1.msra.mxu0 0.0
        %529 = vmatprep.subr.mxu0 0.0
        %530 = vmatpush1.msra.mxu0 0.0
        %531 = vmatprep.subr.mxu0 0.0
        %532 = vmatpush1.msra.mxu0 0.0
        %533 = vmatprep.subr.mxu0 0.0
        %534 = vmatpush1.msra.mxu0 0.0
        %535 = vmatprep.subr.mxu0 0.0
        %536 = vmatpush1.msra.mxu0 0.0
        %537 = vmatprep.subr.mxu0 0.0
        %538 = vmatpush1.msra.mxu0 0.0
        %539 = vmatprep.mubr.f32.mxu0 0.0
        %540 = vmatmul.mubr.f32.gmra.mrb[0].mxu0 %v458
        %v541 = vpop.f32.mrb[0].mxu0
        %v542 = vadd.f32 0.0, %v541
        %v543 = vpop.f32.mrb[0].mxu0
        %544 = vdwg.mxu0
        %v545 = vadd.f32 %v354, %v542
        %546 = vst [vmem:[%s317] sm:$0xff] %v545
        %s547 = sand.u32 %s172, 1
        %s548 = scalar_lea.sflag [#allocation4], %s547
        %s549 = sand.u32 %s172, 1
        %s550 = smul.addr %s549, 8
        %s551 = scalar_lea.vmem [#allocation7], %s550
        // Predicated region
        $region53: #{tpu_custom_call.1} parent=39 // pred_check
          %p552 = pneg %p182
        $region54: #{tpu_custom_call.1} parent=39 // pred_check_branch
          %554 = sbr.rel (%p552) target = $region56
        $region55: #{tpu_custom_call.1} parent=39 // pred_region
          %s556 = ssub.s32 128, 128
          %557 = vsyncadd %s548, %s556
          %s558 = smul.addr %s29, 128
          %s559 = scalar_lea.hbm %s5, %s558
          %s561 = sshll.u32 %s551, 4
          %s562 = int_to_ptr.vmem [resolvable:$true] %s561
          %564 = dma.vmem_to_hbm [thread:$0]  %s562, 128, %s559, %s548
        $region56: #{tpu_custom_call.1} parent=39 // pred_fallthru
          _
      $region40: #{tpu_custom_call.1} parent=5 // pred_fallthru
        _
      %p565 = scmp.le.s32.totalorder 2, %s20
      // Predicated region
      $region57: #{tpu_custom_call.1} parent=5 // pred_check
        %p566 = pneg %p565
      $region58: #{tpu_custom_call.1} parent=5 // pred_check_branch
        %568 = sbr.rel (%p566) target = $region60
      $region59: #{tpu_custom_call.1} parent=5 // pred_region
        %s569 = ssub.s32 %s20, 2
        // Predicated region
        $region61: #{tpu_custom_call.1} parent=59 // pred_check
          %p570 = pneg %p188
        $region62: #{tpu_custom_call.1} parent=59 // pred_check_branch
          %572 = sbr.rel (%p570) target = $region64
        $region63: #{tpu_custom_call.1} parent=59 // pred_region
          %s573 = sand.u32 %s173, 1
          %s574 = scalar_lea.sflag [#allocation4], %s573
          %s575 = sand.u32 %s173, 1
          %s576 = smul.addr %s575, 8
          %s577 = scalar_lea.vmem [#allocation7], %s576
          %578 = dma.done %s574, 128
        $region64: #{tpu_custom_call.1} parent=59 // pred_fallthru
          _
      $region60: #{tpu_custom_call.1} parent=5 // pred_fallthru
        _
    $region6: #{tpu_custom_call.1} parent=1 // loop_footer
      %s24 = sadd.s32 1, %s20
    $region7: #{tpu_custom_call.1} parent=1 // loop_footer_branch
      %19 = sbr.rel target = $region3
    $region8: #{tpu_custom_call.1} parent=1 // loop_exit
      _
    %579 = vsyncpa [#allocation3], 1
    %s580 = scalar_lea.sflag [#allocation3], 1
    %581 = vsyncpa %s580, 1
    %582 = vsyncpa [#allocation6], 1
    %s583 = scalar_lea.sflag [#allocation6], 1
    %584 = vsyncpa %s583, 1
    %585 = vsyncpa [#allocation4], 1
    %s586 = scalar_lea.sflag [#allocation4], 1
    %587 = vsyncpa %s586, 1

</llo_original>
